<compile_context>
chip_gen: v7x
topology: tpu7x:2x2x1
jax: 0.10.0
libtpu: 0.0.40
codegen_flags: <defaults>
</compile_context>

<pallas_src>
import jax
import jax.numpy as jnp
from jax.experimental import pallas as pl
from jax.experimental.pallas import tpu as pltpu

OUT_DIM = 2     # logits of the torch module
OUT_SUB = 8     # logits padded to 8 sublanes (minimal f32 sublane tile)
LANE = 128


def mlp_fused_kernel(xT_ref, w1T_ref, b1T_ref, w234T_ref, b234T_ref, oT_ref):
    # Feature-major: batch on the 128-lane axis, features on sublanes.
    xT = xT_ref[...].astype(jnp.bfloat16)                                 # (F, tb)
    # Layer 1: h^T = relu(W1^T @ x^T + b1^T)   (bf16 MXU operands, f32 accum)
    hT = jnp.dot(w1T_ref[...], xT, preferred_element_type=jnp.float32)    # (l1, tb)
    hT = jnp.maximum(hT + b1T_ref[...], 0.0)
    # Fused layers 2-4 (exact algebraic composition), 2 logits padded to 8 rows.
    outT = jnp.dot(w234T_ref[...], hT.astype(jnp.bfloat16),
                   preferred_element_type=jnp.float32) + b234T_ref[...]   # (8, tb)
    oT_ref[...] = outT.astype(oT_ref.dtype)


def _pick_tb(Bp, tb, max_tb):
    """Pick a batch tile: as large as possible (few grid steps), but keep the
    grid >= 2 'parallel' steps when the batch allows it (v7x megacore), and cap
    the tile so VMEM stays tiny on all generations (v7x: 64 MiB physical)."""
    if tb is not None:
        return tb
    m = Bp // LANE                       # number of 128-lane blocks
    if m <= 1:
        return Bp
    best = 1
    for d in range(1, m + 1):
        if m % d == 0 and d * LANE <= max_tb and (m // d) >= 2:
            best = max(best, d)
    return best * LANE


def mlp3_forward(x, packed, *, tb=None, max_tb=4096):
    """x: (B, input_len) float32. packed: dict from pack_params()."""
    B, F = x.shape
    l1 = packed["w1T"].shape[0]

    # One-time layout op: feature-major activations.  (In a real pipeline the
    # caller would keep activations feature-major and skip this pass.)
    xT = jnp.transpose(x)                                 # (F, B), f32
    Bp = pl.cdiv(B, LANE) * LANE
    if Bp != B:
        # Only for ragged batches; padded lanes are sliced off below.
        xT = jnp.pad(xT, ((0, 0), (0, Bp - B)))

    tb = _pick_tb(Bp, tb, max_tb)
    grid = (Bp // tb,)

    weight_bytes = (packed["w1T"].size + packed["w234T"].size) * 2 \
        + (packed["b1T"].size + packed["b234T"].size) * 4
    cost = pl.CostEstimate(
        flops=2 * Bp * (F * l1 + l1 * OUT_SUB),
        transcendentals=0,
        bytes_accessed=xT.size * 4 + weight_bytes + OUT_SUB * Bp * 4,
    )

    outT = pl.pallas_call(
        mlp_fused_kernel,
        out_shape=jax.ShapeDtypeStruct((OUT_SUB, Bp), jnp.float32),
        grid_spec=pltpu.PrefetchScalarGridSpec(
            num_scalar_prefetch=0,
            grid=grid,
            in_specs=[
                # activation tile: marches along the batch (lane) axis
                pl.BlockSpec((F, tb), lambda i: (0, i)),
                # weights / biases: constant block index -> resident in VMEM
                pl.BlockSpec((l1, F), lambda i: (0, 0)),
                pl.BlockSpec((l1, 1), lambda i: (0, 0)),
                pl.BlockSpec((OUT_SUB, l1), lambda i: (0, 0)),
                pl.BlockSpec((OUT_SUB, 1), lambda i: (0, 0)),
            ],
            out_specs=pl.BlockSpec((OUT_SUB, tb), lambda i: (0, i)),
        ),
        compiler_params=pltpu.CompilerParams(
            dimension_semantics=("parallel",)),
        cost_estimate=cost,
    )(xT, packed["w1T"], packed["b1T"], packed["w234T"], packed["b234T"])

    # Slice the 2 real logits / real batch and return batch-major (B, 2).
    return outT[:OUT_DIM, :B].T


def init_params(key, input_len, l1, l2, l3):
    """Deterministic synthetic parameters (torch nn.Linear init, stored as
    (in, out) so layer i is a plain x @ W_i matmul)."""
    dims = [(input_len, l1), (l1, l2), (l2, l3), (l3, OUT_DIM)]
    params = {}
    for i, (fan_in, fan_out) in enumerate(dims, start=1):
        key, kw, kb = jax.random.split(key, 3)
        bound = 1.0 / jnp.sqrt(fan_in)
        params[f"w{i}"] = jax.random.uniform(
            kw, (fan_in, fan_out), jnp.float32, -bound, bound)
        params[f"b{i}"] = jax.random.uniform(
            kb, (1, fan_out), jnp.float32, -bound, bound)
    return params


def pack_params(params):
    """Fuse layers 2-4 into one linear layer (exact composition, done in f32),
    transpose everything to feature-major, pad the 2 logits to 8 sublanes, and
    cast matmul weights to bf16 (bias adds stay f32 on the VPU)."""
    w234 = params["w2"] @ params["w3"] @ params["w4"]                          # (l1, 2)
    b234 = (params["b2"] @ params["w3"] + params["b3"]) @ params["w4"] + params["b4"]
    l1 = w234.shape[0]
    w234T = jnp.zeros((OUT_SUB, l1), jnp.float32).at[:OUT_DIM, :].set(w234.T)
    b234T = jnp.zeros((OUT_SUB, 1), jnp.float32).at[:OUT_DIM, :].set(b234.T)
    return {
        "w1T": params["w1"].T.astype(jnp.bfloat16),      # (l1, F)
        "b1T": params["b1"].T,                           # (l1, 1) f32
        "w234T": w234T.astype(jnp.bfloat16),             # (8, l1)
        "b234T": b234T,                                  # (8, 1)  f32
    }


def reference_forward_packed(x, packed):
    """Pure-JAX reference with the SAME bf16 operands / fused weights / layout."""
    xT = x.T.astype(jnp.bfloat16)
    hT = jnp.dot(packed["w1T"], xT, preferred_element_type=jnp.float32)
    hT = jnp.maximum(hT + packed["b1T"], 0.0)
    outT = jnp.dot(packed["w234T"], hT.astype(jnp.bfloat16),
                   preferred_element_type=jnp.float32) + packed["b234T"]
    return outT[:OUT_DIM, :].T


def reference_forward_f32(x, params):
    """Full-precision 4-layer forward, matching the torch module exactly."""
    h = jnp.maximum(x @ params["w1"] + params["b1"], 0.0)
    h = h @ params["w2"] + params["b2"]
    h = h @ params["w3"] + params["b3"]
    return h @ params["w4"] + params["b4"]


if __name__ == "__main__":
    # Shapes consistent with the module: x is (batch, input_len); hidden 64/32/16.
    # B=256 -> two 'parallel' grid steps of 128 rows (keeps both v7x TCs busy).
    B, input_len, l1, l2, l3 = 256, 32, 64, 32, 16

    key = jax.random.PRNGKey(0)
    kx, kp = jax.random.split(key)
    x = jax.random.normal(kx, (B, input_len), jnp.float32)
    params = init_params(kp, input_len, l1, l2, l3)
    packed = pack_params(params)

    out = mlp3_forward(x, packed)
    out = jax.block_until_ready(out)
    assert out.shape == (B, OUT_DIM)

    # 1) Exact-path check: same bf16 operands / fused weights / layout as kernel.
    ref_matched = reference_forward_packed(x, packed)
    assert jnp.allclose(out, ref_matched, atol=5e-3, rtol=5e-3)

    # 2) Semantics check vs the full-precision 4-layer forward (tolerance covers
    #    bf16 operand quantization only).
    ref_f32 = reference_forward_f32(x, params)
    assert jnp.allclose(out, ref_f32, atol=5e-2, rtol=5e-2)

    # TODO(synk): data loading / training utilities of the torch class
    # (preprocess_data, DataLoader, optimizer) are out of scope for the forward
    # kernel and intentionally not reproduced.
    print("KERNEL_OK")
</pallas_src>

<mosaic_0001>
module attributes {stable_mosaic.version = 11 : i64} {
  func.func @mlp_fused_kernel(%arg0: i32, %arg1: memref<32x128xf32, #tpu.memory_space<vmem>>, %arg2: memref<64x32xbf16, #tpu.memory_space<vmem>>, %arg3: memref<64x1xf32, #tpu.memory_space<vmem>>, %arg4: memref<8x64xbf16, #tpu.memory_space<vmem>>, %arg5: memref<8x1xf32, #tpu.memory_space<vmem>>, %arg6: memref<8x128xf32, #tpu.memory_space<vmem>>) attributes {dimension_semantics = [#tpu.dimension_semantics<parallel>], iteration_bounds = array<i64: 2>, scalar_prefetch = 0 : i64, scratch_operands = 0 : i64, tpu.core_type = #tpu.core_type<tc>, window_params = [{transform_indices = @transform_0, window_bounds = array<i64: 32, 128>}, {pipeline_mode = #tpu.pipeline_mode<synchronous>, transform_indices = @transform_1, window_bounds = array<i64: 64, 32>}, {pipeline_mode = #tpu.pipeline_mode<synchronous>, transform_indices = @transform_2, window_bounds = array<i64: 64, 1>}, {pipeline_mode = #tpu.pipeline_mode<synchronous>, transform_indices = @transform_3, window_bounds = array<i64: 8, 64>}, {pipeline_mode = #tpu.pipeline_mode<synchronous>, transform_indices = @transform_4, window_bounds = array<i64: 8, 1>}, {transform_indices = @transform_5, window_bounds = array<i64: 8, 128>}]} {
    %c0 = arith.constant 0 : index
    %c0_0 = arith.constant 0 : index
    %0 = vector.load %arg1[%c0, %c0_0] : memref<32x128xf32, #tpu.memory_space<vmem>>, vector<32x128xf32>
    %1 = arith.truncf %0 : vector<32x128xf32> to vector<32x128xbf16>
    %c0_1 = arith.constant 0 : index
    %c0_2 = arith.constant 0 : index
    %2 = vector.load %arg2[%c0_1, %c0_2] : memref<64x32xbf16, #tpu.memory_space<vmem>>, vector<64x32xbf16>
    %cst = arith.constant dense<0.000000e+00> : vector<64x128xf32>
    %3 = tpu.matmul %2, %1, %cst {dimension_numbers = #tpu.dot_dimension_numbers<[1], [0], [0], [1], [0, 0, 1, 1], [], []>} : vector<64x32xbf16>, vector<32x128xbf16>, vector<64x128xf32> -> vector<64x128xf32>
    %c0_3 = arith.constant 0 : index
    %c0_4 = arith.constant 0 : index
    %4 = vector.load %arg3[%c0_3, %c0_4] : memref<64x1xf32, #tpu.memory_space<vmem>>, vector<64x1xf32>
    %5 = vector.broadcast %4 : vector<64x1xf32> to vector<64x128xf32>
    %6 = arith.addf %3, %5 : vector<64x128xf32>
    %cst_5 = arith.constant 0.000000e+00 : f32
    %7 = vector.broadcast %cst_5 : f32 to vector<64x128xf32>
    %8 = arith.maximumf %6, %7 : vector<64x128xf32>
    %c0_6 = arith.constant 0 : index
    %c0_7 = arith.constant 0 : index
    %9 = vector.load %arg4[%c0_6, %c0_7] : memref<8x64xbf16, #tpu.memory_space<vmem>>, vector<8x64xbf16>
    %10 = arith.truncf %8 : vector<64x128xf32> to vector<64x128xbf16>
    %cst_8 = arith.constant dense<0.000000e+00> : vector<8x128xf32>
    %11 = tpu.matmul %9, %10, %cst_8 {dimension_numbers = #tpu.dot_dimension_numbers<[1], [0], [0], [1], [0, 0, 1, 1], [], []>} : vector<8x64xbf16>, vector<64x128xbf16>, vector<8x128xf32> -> vector<8x128xf32>
    %c0_9 = arith.constant 0 : index
    %c0_10 = arith.constant 0 : index
    %12 = vector.load %arg5[%c0_9, %c0_10] : memref<8x1xf32, #tpu.memory_space<vmem>>, vector<8x1xf32>
    %13 = vector.broadcast %12 : vector<8x1xf32> to vector<8x128xf32>
    %14 = arith.addf %11, %13 : vector<8x128xf32>
    %c0_11 = arith.constant 0 : index
    %c0_12 = arith.constant 0 : index
    %15 = vector.load %arg6[%c0_11, %c0_12] : memref<8x128xf32, #tpu.memory_space<vmem>>, vector<8x128xf32>
    tpu.vector_store %arg6[%c0_11, %c0_12], %14 {strides = array<i32>} : memref<8x128xf32, #tpu.memory_space<vmem>>, vector<8x128xf32>,
    return
  }
  func.func @transform_0(%arg0: i32) -> (i32, i32) {
    %c0_i32 = arith.constant 0 : i32
    %c0_i32_0 = arith.constant 0 : i32
    return %c0_i32, %arg0 : i32, i32
  }
  func.func @transform_1(%arg0: i32) -> (i32, i32) {
    %c0_i32 = arith.constant 0 : i32
    %c0_i32_0 = arith.constant 0 : i32
    %c0_i32_1 = arith.constant 0 : i32
    return %c0_i32, %c0_i32_0 : i32, i32
  }
  func.func @transform_2(%arg0: i32) -> (i32, i32) {
    %c0_i32 = arith.constant 0 : i32
    %c0_i32_0 = arith.constant 0 : i32
    %c0_i32_1 = arith.constant 0 : i32
    return %c0_i32, %c0_i32_0 : i32, i32
  }
  func.func @transform_3(%arg0: i32) -> (i32, i32) {
    %c0_i32 = arith.constant 0 : i32
    %c0_i32_0 = arith.constant 0 : i32
    %c0_i32_1 = arith.constant 0 : i32
    return %c0_i32, %c0_i32_0 : i32, i32
  }
  func.func @transform_4(%arg0: i32) -> (i32, i32) {
    %c0_i32 = arith.constant 0 : i32
    %c0_i32_0 = arith.constant 0 : i32
    %c0_i32_1 = arith.constant 0 : i32
    return %c0_i32, %c0_i32_0 : i32, i32
  }
  func.func @transform_5(%arg0: i32) -> (i32, i32) {
    %c0_i32 = arith.constant 0 : i32
    %c0_i32_0 = arith.constant 0 : i32
    return %c0_i32, %arg0 : i32, i32
  }
}

</mosaic_0001>

<llo_original>
// kernel: tpu_custom_call.1
$region0: #{tpu_custom_call.1}
  #allocation0 [shape = 'u32[]', space=smem, size = 0x4, offset = 0x4, fixed_abs, tag = 'smem constant byte address 0x4 - core index']
  #allocation1 [shape = 'u32[144,128]{1,0:T(1,128)}', space=vmem, size = 0x12000, scoped, tag = 'internal scratch']
  %s0 = inlined_call_operand.vmem [shape: f32[32,256], index: 0, kind: input, shape index: {}]
  %s1 = inlined_call_operand.vmem [shape: bf16[64,32], index: 1, kind: input, shape index: {}]
  %s2 = inlined_call_operand.vmem [shape: f32[64,1], index: 2, kind: input, shape index: {}]
  %s3 = inlined_call_operand.vmem [shape: bf16[8,64], index: 3, kind: input, shape index: {}]
  %s4 = inlined_call_operand.vmem [shape: f32[8,1], index: 4, kind: input, shape index: {}]
  %s5 = inlined_call_operand.hbm [shape: f32[8,256], index: 5, kind: output, shape index: {}]
  %s6 = sld [smem:[#allocation0]]
  $region91: #{tpu_custom_call.1} parent=0
    _
  %s8 = ssub.s32 1, %s6
  %s9 = scalar_select 0, %s8, %s6
  $region1: #{tpu_custom_call.1} parent=0
    #allocation2 [shape = 'u8[32768]{0}', space=vmem, size = 0x8000, scoped, tag = 'input window, operand 0']
    #allocation3 [shape = 'u8[8192]{0}', space=vmem, size = 0x2000, scoped, tag = 'output window, operand 0']
    #allocation4 [shape = 's32[2]{0}', space=sflag, size = 0x8, scoped, tag = 'scoped memory for tpu_custom_call.1']
    %10 = vsyncpa [#allocation4], 0
    %s11 = scalar_lea.sflag [#allocation4], 1
    %12 = vsyncpa %s11, 0
    loop: start=0, step=1, limit=4
    $region2: #{tpu_custom_call.1} parent=1 // loop_pre_header
      _
    $region3: #{tpu_custom_call.1} parent=1 // loop_header
      %s14 = sphi 0, %s18
      %p15 = scmp.ge.s32.totalorder %s14, 4
      %s24 = sphi 0, %s26
      %s27 = sphi 0, %s24
      %s28 = sphi 0, %s27
      %s44 = sphi 0, %s28
      %s48 = sphi 0, %s48
      %s50 = sphi 0, %s48
      %s51 = sphi 0, %s50
      %s65 = sphi 0, %s51
      %s69 = sphi 0, %s69
      %s71 = sphi 0, %s69
      %s72 = sphi 0, %s71
      %s86 = sphi 0, %s72
      %s90 = sphi 0, %s90
      %s92 = sphi 0, %s90
      %s93 = sphi 0, %s92
      %s107 = sphi 0, %s93
      %s111 = sphi 0, %s111
      %s113 = sphi 0, %s111
      %s114 = sphi 0, %s113
      %s128 = sphi 0, %s114
      %s134 = sphi 0, %s136
      %s137 = sphi 0, %s134
      %s138 = sphi 0, %s137
      %s154 = sphi 0, %s138
    $region4: #{tpu_custom_call.1} parent=1 // loop_header_branch
      %17 = sbr.rel (%p15) target = $region8
    $region5: #{tpu_custom_call.1} parent=1 // loop_body
      %s19 = ssub.s32 %s14, 1
      %s20 = ssub.s32 %s14, 2
      %s21 = sadd.s32 %s14, 1
      %s22 = ssub.s32 %s14, %s21
      %p23 = scmp.eq.s32.totalorder %s22, 0
      %s25 = sadd.s32 %s24, 1
      %s26 = scalar_select %p23, %s24, %s25
      %p29 = pneg %p23
      %p30 = scmp.eq.s32.totalorder %s14, 1
      %p31 = por %p29, %p30
      %p32 = scmp.ne.s32.totalorder %s24, %s27
      %p33 = scmp.eq.s32.totalorder %s14, 0
      %p34 = por %p32, %p33
      %p35 = scmp.ne.s32.totalorder %s24, %s27
      %p36 = scmp.eq.s32.totalorder %s19, 1
      %p37 = por %p35, %p36
      %p38 = scmp.ne.s32.totalorder %s27, %s28
      %p39 = scmp.eq.s32.totalorder %s19, 0
      %p40 = por %p38, %p39
      %p41 = scmp.ne.s32.totalorder %s27, %s28
      %p42 = scmp.eq.s32.totalorder %s20, 1
      %p43 = por %p41, %p42
      %p45 = scmp.ne.s32.totalorder %s28, %s44
      %p46 = scmp.eq.s32.totalorder %s20, 0
      %p47 = por %p45, %p46
      %s49 = sadd.s32 %s48, 1
      %p52 = scmp.eq.s32.totalorder %s14, 1
      %p53 = scmp.ne.s32.totalorder %s48, %s50
      %p54 = scmp.eq.s32.totalorder %s14, 0
      %p55 = por %p53, %p54
      %p56 = scmp.ne.s32.totalorder %s48, %s50
      %p57 = scmp.eq.s32.totalorder %s19, 1
      %p58 = por %p56, %p57
      %p59 = scmp.ne.s32.totalorder %s50, %s51
      %p60 = scmp.eq.s32.totalorder %s19, 0
      %p61 = por %p59, %p60
      %p62 = scmp.ne.s32.totalorder %s50, %s51
      %p63 = scmp.eq.s32.totalorder %s20, 1
      %p64 = por %p62, %p63
      %p66 = scmp.ne.s32.totalorder %s51, %s65
      %p67 = scmp.eq.s32.totalorder %s20, 0
      %p68 = por %p66, %p67
      %s70 = sadd.s32 %s69, 1
      %p73 = scmp.eq.s32.totalorder %s14, 1
      %p74 = scmp.ne.s32.totalorder %s69, %s71
      %p75 = scmp.eq.s32.totalorder %s14, 0
      %p76 = por %p74, %p75
      %p77 = scmp.ne.s32.totalorder %s69, %s71
      %p78 = scmp.eq.s32.totalorder %s19, 1
      %p79 = por %p77, %p78
      %p80 = scmp.ne.s32.totalorder %s71, %s72
      %p81 = scmp.eq.s32.totalorder %s19, 0
      %p82 = por %p80, %p81
      %p83 = scmp.ne.s32.totalorder %s71, %s72
      %p84 = scmp.eq.s32.totalorder %s20, 1
      %p85 = por %p83, %p84
      %p87 = scmp.ne.s32.totalorder %s72, %s86
      %p88 = scmp.eq.s32.totalorder %s20, 0
      %p89 = por %p87, %p88
      %s91 = sadd.s32 %s90, 1
      %p94 = scmp.eq.s32.totalorder %s14, 1
      %p95 = scmp.ne.s32.totalorder %s90, %s92
      %p96 = scmp.eq.s32.totalorder %s14, 0
      %p97 = por %p95, %p96
      %p98 = scmp.ne.s32.totalorder %s90, %s92
      %p99 = scmp.eq.s32.totalorder %s19, 1
      %p100 = por %p98, %p99
      %p101 = scmp.ne.s32.totalorder %s92, %s93
      %p102 = scmp.eq.s32.totalorder %s19, 0
      %p103 = por %p101, %p102
      %p104 = scmp.ne.s32.totalorder %s92, %s93
      %p105 = scmp.eq.s32.totalorder %s20, 1
      %p106 = por %p104, %p105
      %p108 = scmp.ne.s32.totalorder %s93, %s107
      %p109 = scmp.eq.s32.totalorder %s20, 0
      %p110 = por %p108, %p109
      %s112 = sadd.s32 %s111, 1
      %p115 = scmp.eq.s32.totalorder %s14, 1
      %p116 = scmp.ne.s32.totalorder %s111, %s113
      %p117 = scmp.eq.s32.totalorder %s14, 0
      %p118 = por %p116, %p117
      %p119 = scmp.ne.s32.totalorder %s111, %s113
      %p120 = scmp.eq.s32.totalorder %s19, 1
      %p121 = por %p119, %p120
      %p122 = scmp.ne.s32.totalorder %s113, %s114
      %p123 = scmp.eq.s32.totalorder %s19, 0
      %p124 = por %p122, %p123
      %p125 = scmp.ne.s32.totalorder %s113, %s114
      %p126 = scmp.eq.s32.totalorder %s20, 1
      %p127 = por %p125, %p126
      %p129 = scmp.ne.s32.totalorder %s114, %s128
      %p130 = scmp.eq.s32.totalorder %s20, 0
      %p131 = por %p129, %p130
      %s132 = ssub.s32 %s14, %s21
      %p133 = scmp.eq.s32.totalorder %s132, 0
      %s135 = sadd.s32 %s134, 1
      %s136 = scalar_select %p133, %s134, %s135
      %p139 = pneg %p133
      %p140 = scmp.eq.s32.totalorder %s14, 1
      %p141 = por %p139, %p140
      %p142 = scmp.ne.s32.totalorder %s134, %s137
      %p143 = scmp.eq.s32.totalorder %s14, 0
      %p144 = por %p142, %p143
      %p145 = scmp.ne.s32.totalorder %s134, %s137
      %p146 = scmp.eq.s32.totalorder %s19, 1
      %p147 = por %p145, %p146
      %p148 = scmp.ne.s32.totalorder %s137, %s138
      %p149 = scmp.eq.s32.totalorder %s19, 0
      %p150 = por %p148, %p149
      %p151 = scmp.ne.s32.totalorder %s137, %s138
      %p152 = scmp.eq.s32.totalorder %s20, 1
      %p153 = por %p151, %p152
      %p155 = scmp.ne.s32.totalorder %s138, %s154
      %p156 = scmp.eq.s32.totalorder %s20, 0
      %p157 = por %p155, %p156
      %p158 = scmp.le.s32.totalorder 1, %s14
      %p159 = scmp.lt.s32.totalorder %s14, 3
      %p160 = pnand %p158, %p159
      %p161 = pneg %p160
      // Predicated region
      $region9: #{tpu_custom_call.1} parent=5 // pred_check
        _
      $region10: #{tpu_custom_call.1} parent=5 // pred_check_branch
        %163 = sbr.rel (%p160) target = $region12
      $region11: #{tpu_custom_call.1} parent=5 // pred_region
        %s164 = ssub.s32 %s14, 1
        // Predicated region
        $region13: #{tpu_custom_call.1} parent=11 // pred_check
          %p165 = pneg %p61
        $region14: #{tpu_custom_call.1} parent=11 // pred_check_branch
          %167 = sbr.rel (%p165) target = $region16
        $region15: #{tpu_custom_call.1} parent=11 // pred_region
          _
        $region16: #{tpu_custom_call.1} parent=11 // pred_fallthru
          _
        // Predicated region
        $region17: #{tpu_custom_call.1} parent=11 // pred_check
          %p168 = pneg %p82
        $region18: #{tpu_custom_call.1} parent=11 // pred_check_branch
          %170 = sbr.rel (%p168) target = $region20
        $region19: #{tpu_custom_call.1} parent=11 // pred_region
          _
        $region20: #{tpu_custom_call.1} parent=11 // pred_fallthru
          _
        // Predicated region
        $region21: #{tpu_custom_call.1} parent=11 // pred_check
          %p171 = pneg %p103
        $region22: #{tpu_custom_call.1} parent=11 // pred_check_branch
          %173 = sbr.rel (%p171) target = $region24
        $region23: #{tpu_custom_call.1} parent=11 // pred_region
          _
        $region24: #{tpu_custom_call.1} parent=11 // pred_fallthru
          _
        // Predicated region
        $region25: #{tpu_custom_call.1} parent=11 // pred_check
          %p174 = pneg %p124
        $region26: #{tpu_custom_call.1} parent=11 // pred_check_branch
          %176 = sbr.rel (%p174) target = $region28
        $region27: #{tpu_custom_call.1} parent=11 // pred_region
          _
        $region28: #{tpu_custom_call.1} parent=11 // pred_fallthru
          _
      $region12: #{tpu_custom_call.1} parent=5 // pred_fallthru
        _
      %p177 = scmp.lt.s32.totalorder %s14, 2
      // Predicated region
      $region29: #{tpu_custom_call.1} parent=5 // pred_check
        %p178 = pneg %p177
      $region30: #{tpu_custom_call.1} parent=5 // pred_check_branch
        %180 = sbr.rel (%p178) target = $region32
      $region31: #{tpu_custom_call.1} parent=5 // pred_region
        // Predicated region
        $region33: #{tpu_custom_call.1} parent=31 // pred_check
          %p181 = pneg %p34
        $region34: #{tpu_custom_call.1} parent=31 // pred_check_branch
          %183 = sbr.rel (%p181) target = $region36
        $region35: #{tpu_custom_call.1} parent=31 // pred_region
          %s184 = sand.u32 %s24, 1
          %s185 = sand.u32 %s24, 1
          %s186 = smul.addr %s185, 32
          %s187 = scalar_lea.vmem [#allocation2], %s186
          %s188 = smul.addr %s14, 8
          %s189 = scalar_lea.vmem %s0, %s188
          // Predicated region
          $region37: #{tpu_custom_call.1} parent=35 // pred_check
            _
          $region38: #{tpu_custom_call.1} parent=35 // pred_check_branch
            %191 = sbr.rel (0) target = $region40
          $region39: #{tpu_custom_call.1} parent=35 // pred_region
            // Predicated region
            $region41: #{tpu_custom_call.1} parent=39 // pred_check
              _
            $region42: #{tpu_custom_call.1} parent=39 // pred_check_branch
              %193 = sbr.rel (0) target = $region44
            $region43: #{tpu_custom_call.1} parent=39 // pred_region
              // Predicated region
              $region56: #{tpu_custom_call.1} parent=43 // pred_check
                _
              $region57: #{tpu_custom_call.1} parent=43 // pred_check_branch
                %214 = sbr.rel (0) target = $region59
              $region58: #{tpu_custom_call.1} parent=43 // pred_region
                loop: start=0, step=1, limit=1
                $region60: #{tpu_custom_call.1} parent=58 // loop_pre_header
                  _
                $region61: #{tpu_custom_call.1} parent=58 // loop_header
                  %s216 = sphi 0, %s220
                  %p217 = scmp.ge.s32.totalorder %s216, 1
                  %s221 = sphi %s189, %s189
                  %s222 = sphi %s187, %s187
                $region62: #{tpu_custom_call.1} parent=58 // loop_header_branch
                  %219 = sbr.rel (%p217) target = $region66
                $region63: #{tpu_custom_call.1} parent=58 // loop_body
                  %v223 = vld [vmem:[%s221] sm:$0xff]
                  %224 = vst [vmem:[%s222] sm:$0xff] %v223
                  %v225 = vld [vmem:[%s221 + $0x10] sm:$0xff]
                  %226 = vst [vmem:[%s222 + $0x8] sm:$0xff] %v225
                  %v227 = vld [vmem:[%s221 + $0x20] sm:$0xff]
                  %228 = vst [vmem:[%s222 + $0x10] sm:$0xff] %v227
                  %v229 = vld [vmem:[%s221 + $0x30] sm:$0xff]
                  %230 = vst [vmem:[%s222 + $0x18] sm:$0xff] %v229
                $region64: #{tpu_custom_call.1} parent=58 // loop_footer
                  %s220 = sadd.s32 1, %s216
                $region65: #{tpu_custom_call.1} parent=58 // loop_footer_branch
                  %215 = sbr.rel target = $region61
                $region66: #{tpu_custom_call.1} parent=58 // loop_exit
                  _
              $region59: #{tpu_custom_call.1} parent=43 // pred_fallthru
                _
              // Predicated region
              $region67: #{tpu_custom_call.1} parent=43 // pred_check
                _
              $region68: #{tpu_custom_call.1} parent=43 // pred_check_branch
                %232 = sbr.rel target = $region70
              $region69: #{tpu_custom_call.1} parent=43 // pred_region
                _
              $region70: #{tpu_custom_call.1} parent=43 // pred_fallthru
                _
            $region44: #{tpu_custom_call.1} parent=39 // pred_fallthru
              _
            // Predicated region
            $region45: #{tpu_custom_call.1} parent=39 // pred_check
              _
            $region46: #{tpu_custom_call.1} parent=39 // pred_check_branch
              %195 = sbr.rel target = $region48
            $region47: #{tpu_custom_call.1} parent=39 // pred_region
              loop: start=0, step=1, limit=1
              $region49: #{tpu_custom_call.1} parent=47 // loop_pre_header
                _
              $region50: #{tpu_custom_call.1} parent=47 // loop_header
                %s198 = sphi 0, %s202
                %p199 = scmp.ge.s32.totalorder %s198, 1
                %s203 = sphi %s189, %s189
                %s204 = sphi %s187, %s187
              $region51: #{tpu_custom_call.1} parent=47 // loop_header_branch
                %201 = sbr.rel (%p199) target = $region55
              $region52: #{tpu_custom_call.1} parent=47 // loop_body
                %v205 = vld [vmem:[%s203] sm:$0xff]
                %206 = vst [vmem:[%s204] sm:$0xff] %v205
                %v207 = vld [vmem:[%s203 + $0x10] sm:$0xff]
                %208 = vst [vmem:[%s204 + $0x8] sm:$0xff] %v207
                %v209 = vld [vmem:[%s203 + $0x20] sm:$0xff]
                %210 = vst [vmem:[%s204 + $0x10] sm:$0xff] %v209
                %v211 = vld [vmem:[%s203 + $0x30] sm:$0xff]
                %212 = vst [vmem:[%s204 + $0x18] sm:$0xff] %v211
              $region53: #{tpu_custom_call.1} parent=47 // loop_footer
                %s202 = sadd.s32 1, %s198
              $region54: #{tpu_custom_call.1} parent=47 // loop_footer_branch
                %197 = sbr.rel target = $region50
              $region55: #{tpu_custom_call.1} parent=47 // loop_exit
                _
            $region48: #{tpu_custom_call.1} parent=39 // pred_fallthru
              _
          $region40: #{tpu_custom_call.1} parent=35 // pred_fallthru
            _
          %233 = vnop
        $region36: #{tpu_custom_call.1} parent=31 // pred_fallthru
          _
      $region32: #{tpu_custom_call.1} parent=5 // pred_fallthru
        _
      %p234 = scmp.le.s32.totalorder 1, %s14
      %p235 = scmp.lt.s32.totalorder %s14, 3
      %p236 = pnand %p234, %p235
      %p237 = pneg %p236
      // Predicated region
      $region71: #{tpu_custom_call.1} parent=5 // pred_check
        _
      $region72: #{tpu_custom_call.1} parent=5 // pred_check_branch
        %239 = sbr.rel (%p236) target = $region74
      $region73: #{tpu_custom_call.1} parent=5 // pred_region
        %s240 = ssub.s32 %s14, 1
        %s241 = sand.u32 %s27, 1
        %s242 = sand.u32 %s27, 1
        %s243 = smul.addr %s242, 32
        %s244 = scalar_lea.vmem [#allocation2], %s243
        // Predicated region
        $region75: #{tpu_custom_call.1} parent=73 // pred_check
          %p245 = pneg %p40
        $region76: #{tpu_custom_call.1} parent=73 // pred_check_branch
          %247 = sbr.rel (%p245) target = $region78
        $region77: #{tpu_custom_call.1} parent=73 // pred_region
          _
        $region78: #{tpu_custom_call.1} parent=73 // pred_fallthru
          _
        %s248 = sand.u32 %s27, 1
        %s249 = sand.u32 %s27, 1
        %s250 = smul.addr %s249, 32
        %s251 = scalar_lea.vmem [#allocation2], %s250
        %p252 = pneg %p40
        %p253 = pneg %p37
        %p254 = pneg %p61
        %p255 = pneg %p58
        %p256 = pneg %p82
        %p257 = pneg %p79
        %p258 = pneg %p103
        %p259 = pneg %p100
        %p260 = pneg %p124
        %p261 = pneg %p121
        %p262 = pneg %p150
        %p263 = pneg %p147
        %s264 = sand.u32 %s137, 1
        %s265 = scalar_lea.sflag [#allocation4], %s264
        %s266 = sand.u32 %s137, 1
        %s267 = smul.addr %s266, 8
        %s268 = scalar_lea.vmem [#allocation3], %s267
        %v270 = vld [vmem:[%s244] sm:$0xff]
        %v271 = vld [vmem:[%s244 + $0x8] sm:$0xff]
        %v272 = vld [vmem:[%s244 + $0x10] sm:$0xff]
        %v273 = vld [vmem:[%s244 + $0x18] sm:$0xff]
        %v274 = vpack.c.bf16 %v271, %v270
        %v275 = vpack.c.bf16 %v273, %v272
        %v276 = vld [vmem:[%s1] sm:$0xf]
        %v277 = vld [vmem:[%s1 + $0x4] sm:$0xf]
        %v278 = vld [vmem:[%s1 + $0x8] sm:$0xf]
        %v279 = vld [vmem:[%s1 + $0xc] sm:$0xf]
        %v280 = vld [vmem:[%s1 + $0x10] sm:$0xf]
        %v281 = vld [vmem:[%s1 + $0x14] sm:$0xf]
        %v282 = vld [vmem:[%s1 + $0x18] sm:$0xf]
        %v283 = vld [vmem:[%s1 + $0x1c] sm:$0xf]
        %v284 = vld [vmem:[%s2] sm:$0xff]
        %v285 = vld [vmem:[%s2 + $0x8] sm:$0xff]
        %v286 = vld [vmem:[%s2 + $0x10] sm:$0xff]
        %v287 = vld [vmem:[%s2 + $0x18] sm:$0xff]
        %v288 = vld [vmem:[%s2 + $0x20] sm:$0xff]
        %v289 = vld [vmem:[%s2 + $0x28] sm:$0xff]
        %v290 = vld [vmem:[%s2 + $0x30] sm:$0xff]
        %v291 = vld [vmem:[%s2 + $0x38] sm:$0xff]
        %293 = vset.pattern.permute.xlu0 0
        %294 = vperm.xlu0 %293, %v284
        %v295 = vpop.permute.xlu0 %294
        %298 = vset.pattern.permute.xlu0 0
        %299 = vperm.xlu0 %298, %v285
        %v300 = vpop.permute.xlu0 %299
        %303 = vset.pattern.permute.xlu0 0
        %304 = vperm.xlu0 %303, %v286
        %v305 = vpop.permute.xlu0 %304
        %308 = vset.pattern.permute.xlu0 0
        %309 = vperm.xlu0 %308, %v287
        %v310 = vpop.permute.xlu0 %309
        %313 = vset.pattern.permute.xlu0 0
        %314 = vperm.xlu0 %313, %v288
        %v315 = vpop.permute.xlu0 %314
        %318 = vset.pattern.permute.xlu0 0
        %319 = vperm.xlu0 %318, %v289
        %v320 = vpop.permute.xlu0 %319
        %323 = vset.pattern.permute.xlu0 0
        %324 = vperm.xlu0 %323, %v290
        %v325 = vpop.permute.xlu0 %324
        %328 = vset.pattern.permute.xlu0 0
        %329 = vperm.xlu0 %328, %v291
        %v330 = vpop.permute.xlu0 %329
        %v340 = vunpack.c.l.b16 %v276
        %v341 = vunpack.c.l.b16 %v277
        %v342 = vunpack.c.l.b16 %v278
        %v343 = vunpack.c.l.b16 %v279
        %v344 = vunpack.c.l.b16 %v280
        %v345 = vunpack.c.l.b16 %v281
        %v346 = vunpack.c.l.b16 %v282
        %v347 = vunpack.c.l.b16 %v283
        %v348 = vpack.c.b16 %v341, %v340
        %v349 = vpack.c.b16 %v343, %v342
        %v350 = vpack.c.b16 %v345, %v344
        %v351 = vpack.c.b16 %v347, %v346
        %vm352 = vcmask 261120
        %v354 = vsel %vm352, %v348, 0
        %v357 = vsel %vm352, %v349, 0
        %v360 = vsel %vm352, %v350, 0
        %v363 = vsel %vm352, %v351, 0
        %365 = vmatprep.subr.bf16.mxu0 0
        %366 = vmatpush1.bf16.msra.mxu0 %v274
        %367 = vmatprep.subr.bf16.mxu0 0
        %368 = vmatpush1.bf16.msra.mxu0 %v275
        %369 = vmatprep.subr.bf16.mxu0 0
        %370 = vmatpush1.bf16.msra.mxu0 0
        %371 = vmatprep.subr.bf16.mxu0 0
        %372 = vmatpush1.bf16.msra.mxu0 0
        %373 = vmatprep.subr.bf16.mxu0 0
        %374 = vmatpush1.bf16.msra.mxu0 0
        %375 = vmatprep.subr.bf16.mxu0 0
        %376 = vmatpush1.bf16.msra.mxu0 0
        %377 = vmatprep.subr.bf16.mxu0 0
        %378 = vmatpush1.bf16.msra.mxu0 0
        %379 = vmatprep.subr.bf16.mxu0 0
        %380 = vmatpush1.bf16.msra.mxu0 0
        %381 = vmatprep.subr.bf16.mxu0 0
        %382 = vmatpush1.bf16.msra.mxu0 0
        %383 = vmatprep.subr.bf16.mxu0 0
        %384 = vmatpush1.bf16.msra.mxu0 0
        %385 = vmatprep.subr.bf16.mxu0 0
        %386 = vmatpush1.bf16.msra.mxu0 0
        %387 = vmatprep.subr.bf16.mxu0 0
        %388 = vmatpush1.bf16.msra.mxu0 0
        %389 = vmatprep.subr.bf16.mxu0 0
        %390 = vmatpush1.bf16.msra.mxu0 0
        %391 = vmatprep.subr.bf16.mxu0 0
        %392 = vmatpush1.bf16.msra.mxu0 0
        %393 = vmatprep.subr.bf16.mxu0 0
        %394 = vmatpush1.bf16.msra.mxu0 0
        %395 = vmatprep.subr.bf16.mxu0 0
        %396 = vmatpush1.bf16.msra.mxu0 0
        %397 = vmatprep.mubr.bf16.mxu0 0
        %398 = vmatmul.mubr.bf16.gmra.mrb[0].mxu0 %v354
        %v399 = vpop.f32.mrb[0].mxu0
        %v400 = vadd.f32 %v295, %v399
        %v401 = vpop.f32.mrb[0].mxu0
        %v402 = vpop.f32.mrb[0].mxu0
        %v403 = vadd.f32 %v300, %v402
        %v404 = vpop.f32.mrb[0].mxu0
        %405 = vmatprep.mubr.bf16.mxu0 0
        %406 = vmatmul.mubr.bf16.gmra.mrb[0].mxu0 %v357
        %v407 = vpop.f32.mrb[0].mxu0
        %v408 = vadd.f32 %v305, %v407
        %v409 = vpop.f32.mrb[0].mxu0
        %v410 = vpop.f32.mrb[0].mxu0
        %v411 = vadd.f32 %v310, %v410
        %v412 = vpop.f32.mrb[0].mxu0
        %413 = vmatprep.mubr.bf16.mxu0 0
        %414 = vmatmul.mubr.bf16.gmra.mrb[0].mxu0 %v360
        %v415 = vpop.f32.mrb[0].mxu0
        %v416 = vadd.f32 %v315, %v415
        %v417 = vpop.f32.mrb[0].mxu0
        %v418 = vpop.f32.mrb[0].mxu0
        %v419 = vadd.f32 %v320, %v418
        %v420 = vpop.f32.mrb[0].mxu0
        %421 = vmatprep.mubr.bf16.mxu0 0
        %422 = vmatmul.mubr.bf16.gmra.mrb[0].mxu0 %v363
        %v423 = vpop.f32.mrb[0].mxu0
        %v424 = vadd.f32 %v325, %v423
        %v425 = vpop.f32.mrb[0].mxu0
        %v426 = vpop.f32.mrb[0].mxu0
        %v427 = vadd.f32 %v330, %v426
        %v428 = vpop.f32.mrb[0].mxu0
        %429 = vdwg.mxu0
        %v430 = vmax.f32 %v400, 0.0
        %v431 = vmax.f32 %v403, 0.0
        %v432 = vmax.f32 %v408, 0.0
        %v433 = vmax.f32 %v411, 0.0
        %v434 = vmax.f32 %v416, 0.0
        %v435 = vmax.f32 %v419, 0.0
        %v436 = vmax.f32 %v424, 0.0
        %v437 = vmax.f32 %v427, 0.0
        %v438 = vld [vmem:[%s3] sm:$0xf]
        %v439 = vpack.c.bf16 %v431, %v430
        %v440 = vpack.c.bf16 %v433, %v432
        %v441 = vpack.c.bf16 %v435, %v434
        %v442 = vpack.c.bf16 %v437, %v436
        %v443 = vld [vmem:[%s4] sm:$0xff]
        %445 = vset.pattern.permute.xlu0 0
        %446 = vperm.xlu0 %445, %v443
        %v447 = vpop.permute.xlu0 %446
        %vm449 = vcmask 523264
        %v451 = vsel %vm449, %v438, 0
        %453 = vmatprep.subr.bf16.mxu0 0
        %454 = vmatpush1.bf16.msra.mxu0 %v439
        %455 = vmatprep.subr.bf16.mxu0 0
        %456 = vmatpush1.bf16.msra.mxu0 %v440
        %457 = vmatprep.subr.bf16.mxu0 0
        %458 = vmatpush1.bf16.msra.mxu0 %v441
        %459 = vmatprep.subr.bf16.mxu0 0
        %460 = vmatpush1.bf16.msra.mxu0 %v442
        %461 = vmatprep.subr.bf16.mxu0 0
        %462 = vmatpush1.bf16.msra.mxu0 0
        %463 = vmatprep.subr.bf16.mxu0 0
        %464 = vmatpush1.bf16.msra.mxu0 0
        %465 = vmatprep.subr.bf16.mxu0 0
        %466 = vmatpush1.bf16.msra.mxu0 0
        %467 = vmatprep.subr.bf16.mxu0 0
        %468 = vmatpush1.bf16.msra.mxu0 0
        %469 = vmatprep.subr.bf16.mxu0 0
        %470 = vmatpush1.bf16.msra.mxu0 0
        %471 = vmatprep.subr.bf16.mxu0 0
        %472 = vmatpush1.bf16.msra.mxu0 0
        %473 = vmatprep.subr.bf16.mxu0 0
        %474 = vmatpush1.bf16.msra.mxu0 0
        %475 = vmatprep.subr.bf16.mxu0 0
        %476 = vmatpush1.bf16.msra.mxu0 0
        %477 = vmatprep.subr.bf16.mxu0 0
        %478 = vmatpush1.bf16.msra.mxu0 0
        %479 = vmatprep.subr.bf16.mxu0 0
        %480 = vmatpush1.bf16.msra.mxu0 0
        %481 = vmatprep.subr.bf16.mxu0 0
        %482 = vmatpush1.bf16.msra.mxu0 0
        %483 = vmatprep.subr.bf16.mxu0 0
        %484 = vmatpush1.bf16.msra.mxu0 0
        %485 = vmatprep.mubr.bf16.mxu0 0
        %486 = vmatmul.mubr.bf16.gmra.mrb[0].mxu0 %v451
        %v487 = vpop.f32.mrb[0].mxu0
        %v488 = vadd.f32 %v447, %v487
        %v489 = vpop.f32.mrb[0].mxu0
        %v490 = vpop.f32.mrb[0].mxu0
        %v491 = vpop.f32.mrb[0].mxu0
        %492 = vdwg.mxu0
        %493 = vst [vmem:[%s268] sm:$0xff] %v488
        %s494 = sand.u32 %s137, 1
        %s495 = scalar_lea.sflag [#allocation4], %s494
        %s496 = sand.u32 %s137, 1
        %s497 = smul.addr %s496, 8
        %s498 = scalar_lea.vmem [#allocation3], %s497
        // Predicated region
        $region79: #{tpu_custom_call.1} parent=73 // pred_check
          %p499 = pneg %p147
        $region80: #{tpu_custom_call.1} parent=73 // pred_check_branch
          %501 = sbr.rel (%p499) target = $region82
        $region81: #{tpu_custom_call.1} parent=73 // pred_region
          %s503 = ssub.s32 128, 128
          %504 = vsyncadd %s495, %s503
          %s505 = smul.addr %s19, 128
          %s506 = scalar_lea.hbm %s5, %s505
          %s508 = sshll.u32 %s498, 4
          %s509 = int_to_ptr.vmem [resolvable:$true] %s508
          %511 = dma.vmem_to_hbm [thread:$0]  %s509, 128, %s506, %s495
        $region82: #{tpu_custom_call.1} parent=73 // pred_fallthru
          _
      $region74: #{tpu_custom_call.1} parent=5 // pred_fallthru
        _
      %p512 = scmp.le.s32.totalorder 2, %s14
      // Predicated region
      $region83: #{tpu_custom_call.1} parent=5 // pred_check
        %p513 = pneg %p512
      $region84: #{tpu_custom_call.1} parent=5 // pred_check_branch
        %515 = sbr.rel (%p513) target = $region86
      $region85: #{tpu_custom_call.1} parent=5 // pred_region
        %s516 = ssub.s32 %s14, 2
        // Predicated region
        $region87: #{tpu_custom_call.1} parent=85 // pred_check
          %p517 = pneg %p153
        $region88: #{tpu_custom_call.1} parent=85 // pred_check_branch
          %519 = sbr.rel (%p517) target = $region90
        $region89: #{tpu_custom_call.1} parent=85 // pred_region
          %s520 = sand.u32 %s138, 1
          %s521 = scalar_lea.sflag [#allocation4], %s520
          %s522 = sand.u32 %s138, 1
          %s523 = smul.addr %s522, 8
          %s524 = scalar_lea.vmem [#allocation3], %s523
          %525 = dma.done %s521, 128
        $region90: #{tpu_custom_call.1} parent=85 // pred_fallthru
          _
      $region86: #{tpu_custom_call.1} parent=5 // pred_fallthru
        _
    $region6: #{tpu_custom_call.1} parent=1 // loop_footer
      %s18 = sadd.s32 1, %s14
    $region7: #{tpu_custom_call.1} parent=1 // loop_footer_branch
      %13 = sbr.rel target = $region3
    $region8: #{tpu_custom_call.1} parent=1 // loop_exit
      _
    %526 = vsyncpa [#allocation4], 1
    %s527 = scalar_lea.sflag [#allocation4], 1
    %528 = vsyncpa %s527, 1

</llo_original>
